<compile_context>
chip_gen: v6e
topology: v6e:2x2x1
jax: 0.10.0
libtpu: 0.0.40
codegen_flags: <defaults>
</compile_context>

<pallas_src>
import functools
import math

import jax
import jax.numpy as jnp
from jax import lax
from jax.experimental import pallas as pl
from jax.experimental.pallas import tpu as pltpu


def _round_up(x, m):
    return ((x + m - 1) // m) * m


def _sublane_multiple(dtype):
    # Native rows-per-sublane packing: 8 (f32), 16 (bf16/f16), 32 (int8/fp8).
    return max(8, 32 // jnp.dtype(dtype).itemsize)


def _vmem_budget():
    """(input-tile budget, vmem_limit_bytes), generation-aware."""
    try:
        cap = int(pltpu.get_tpu_info().vmem_capacity_bytes)
    except Exception:  # not on TPU / API unavailable: be conservative
        cap = 64 * 1024 * 1024
    if cap >= 128 * 1024 * 1024:  # v5e / v6e
        return 24 * 1024 * 1024, 64 * 1024 * 1024
    return 12 * 1024 * 1024, 32 * 1024 * 1024  # v7x (64 MiB physical)


def _choose_tile_n(n, c, itemsize, sub_mult, tile_budget):
    n_pad = _round_up(n, sub_mult)
    if n <= sub_mult:
        return n  # full-extent block is always legal
    # Per tile row in VMEM: double-buffered native-dtype logits + tiny f32 out.
    # (f32 working intermediates are per sub-chunk, bounded separately.)
    per_row = c * 2 * itemsize + 16
    tile = (tile_budget // per_row) // sub_mult * sub_mult
    tile = max(sub_mult, min(tile, n_pad))
    # Guarantee >= 2 grid steps when possible so both v7x TensorCores get rows.
    if tile >= n_pad:
        tile = max(sub_mult, _round_up(pl.cdiv(n_pad, 2), sub_mult))
    return tile


def _choose_sub(tile_n, c, sub_mult):
    """Rows per inner sub-chunk: keep ~4 live (sub, C) f32 arrays vreg-resident."""
    target = 64 * 1024  # bytes per f32 intermediate (~16 of the 64 vregs)
    sub = max(sub_mult, (target // max(c * 4, 1)) // sub_mult * sub_mult)
    sub = min(sub, tile_n)
    while tile_n % sub != 0:  # terminates: sub_mult divides tile_n
        sub -= sub_mult
    return max(sub, min(sub_mult, tile_n))


def _hint(x, m):
    """pl.multiple_of only for traced values; Python ints pass through."""
    return x if isinstance(x, int) else pl.multiple_of(x, m)


def _smooth_ce_kernel(logits_ref, labels_ref, loss_ref, *,
                      on, off, h_const, tile_n, sub, n_sub):
    """One (tile_n, C) tile of rows, processed in (sub, C) vreg-sized chunks."""
    base = pl.program_id(0) * tile_n
    c = logits_ref.shape[1]
    # Hoisted out of the chunk loop (JAX does not CSE broadcast_in_dim).
    class_ids = lax.broadcasted_iota(jnp.int32, (sub, c), 1)

    def row_chunk(j, carry):
        r0 = _hint(j * sub, sub)
        logits = logits_ref[pl.ds(r0, sub), :].astype(jnp.float32)   # (sub, C)
        labels = labels_ref[pl.ds(_hint(base + j * sub, sub), sub), :]  # (sub, 1)

        # Numerically stable log(softmax + 1e-5) without a probs tile:
        #   log(exps/denom + 1e-5) = log(exps + 1e-5*denom) - log(denom)
        row_max = jnp.max(logits, axis=1, keepdims=True)
        exps = jnp.exp(logits - row_max)
        denom = jnp.sum(exps, axis=1, keepdims=True)
        logp = jnp.log(exps + 1e-5 * denom) - jnp.log(denom)

        # Single fused weighted reduction: sum_c target_c * logp_c.
        weights = jnp.where(class_ids == labels, on, off)
        cross = jnp.sum(weights * logp, axis=1, keepdims=True)

        # loss = H(target) - cross ; H(target) folded at trace time.
        loss_ref[pl.ds(r0, sub), :] = h_const - cross
        return carry

    if n_sub <= 4:
        for j in range(n_sub):      # fully unrolled short loop
            row_chunk(j, 0)
    else:
        lax.fori_loop(0, n_sub, row_chunk, 0)


def smooth_cross_entropy(logits, labels, epsilon=0.1, tile_n=None):
    """logits: (N, C) float (any dtype), labels: (N,) int. Returns (N,) f32 loss."""
    n, c = logits.shape
    assert c >= 2, "SmoothCrossEntropy needs at least 2 classes (divides by C-1)"
    epsilon = float(epsilon)
    assert 0.0 < epsilon < 1.0, "epsilon must be in (0, 1) so log(target) is finite"

    off = epsilon / (c - 1)
    on = 1.0 - epsilon
    # Constant entropy term sum_c target*log(target).
    h_const = on * math.log(on) + (c - 1) * off * math.log(off)

    itemsize = jnp.dtype(logits.dtype).itemsize
    sub_mult = _sublane_multiple(logits.dtype)
    tile_budget, vmem_limit = _vmem_budget()

    if tile_n is None:
        tile_n = _choose_tile_n(n, c, itemsize, sub_mult, tile_budget)
    elif n <= sub_mult:
        tile_n = n
    else:
        tile_n = min(_round_up(int(tile_n), sub_mult), _round_up(n, sub_mult))

    grid_n = pl.cdiv(n, tile_n)
    sub = _choose_sub(tile_n, c, sub_mult)
    n_sub = tile_n // sub

    # Labels: one resident VMEM block for the whole grid (tiny: N*4 bytes raw);
    # padded so every in-kernel pl.ds slice stays in bounds on the last tile.
    # TODO(synk): for very large N, tile the labels instead of keeping them resident.
    n_lab = grid_n * tile_n
    labels_2d = labels.astype(jnp.int32).reshape(n, 1)
    if n_lab > n:
        labels_2d = jnp.pad(labels_2d, ((0, n_lab - n), (0, 0)))

    kernel = functools.partial(
        _smooth_ce_kernel, on=on, off=off, h_const=h_const,
        tile_n=tile_n, sub=sub, n_sub=n_sub)

    loss_2d = pl.pallas_call(
        kernel,
        out_shape=jax.ShapeDtypeStruct((n, 1), jnp.float32),
        grid=(grid_n,),
        in_specs=[
            pl.BlockSpec((tile_n, c), lambda i: (i, 0)),   # logits tile, native dtype
            pl.BlockSpec((n_lab, 1), lambda i: (0, 0)),    # labels, resident across grid
        ],
        out_specs=pl.BlockSpec((tile_n, 1), lambda i: (i, 0)),
        compiler_params=pltpu.CompilerParams(
            dimension_semantics=("parallel",),             # rows independent -> megacore
            vmem_limit_bytes=vmem_limit,
        ),
        cost_estimate=pl.CostEstimate(
            flops=7 * n * c,
            transcendentals=2 * n * c,                     # exp + log per element
            bytes_accessed=n * c * itemsize + 2 * n * 4,
        ),
    )(logits, labels_2d)

    return loss_2d.reshape(n)


def _reference(logits, labels, epsilon=0.1):
    n, c = logits.shape
    target = jnp.full((n, c), epsilon / (c - 1), dtype=jnp.float32)
    target = target.at[jnp.arange(n), labels].set(1.0 - epsilon)
    probs = jax.nn.softmax(logits.astype(jnp.float32), axis=1)
    logp = jnp.log(probs + 1e-5)
    return jnp.sum(target * (jnp.log(target) - logp), axis=1)


if __name__ == "__main__":
    key = jax.random.PRNGKey(0)
    k1, k2, k3, k4, k5, k6 = jax.random.split(key, 6)

    # Case 1: tiny f32 problem, single full-extent block.
    N1, C1 = 8, 32
    logits1 = jax.random.normal(k1, (N1, C1), dtype=jnp.float32)
    labels1 = jax.random.randint(k2, (N1,), 0, C1, dtype=jnp.int32)
    loss1 = jax.block_until_ready(smooth_cross_entropy(logits1, labels1, epsilon=0.1))
    ref1 = _reference(logits1, labels1, epsilon=0.1)
    assert loss1.shape == (N1,)
    assert jnp.allclose(loss1, ref1, atol=1e-5, rtol=1e-5), (loss1, ref1)

    # Case 2: bf16 input, multi-tile grid with a bf16-native 16-row tile
    # (partial last block exercises padding; cast to f32 happens in-kernel).
    N2, C2 = 24, 128
    logits2 = jax.random.normal(k3, (N2, C2), dtype=jnp.float32).astype(jnp.bfloat16)
    labels2 = jax.random.randint(k4, (N2,), 0, C2, dtype=jnp.int32)
    loss2 = jax.block_until_ready(
        smooth_cross_entropy(logits2, labels2, epsilon=0.1, tile_n=16))
    ref2 = _reference(logits2, labels2, epsilon=0.1)
    assert loss2.shape == (N2,)
    assert jnp.allclose(loss2, ref2, atol=2e-3, rtol=2e-3), (loss2, ref2)

    # Case 3: wide-C f32 tile processed in multiple vreg-sized sub-chunks
    # (exercises the in-kernel fori_loop path).
    N3, C3 = 64, 4096
    logits3 = jax.random.normal(k5, (N3, C3), dtype=jnp.float32)
    labels3 = jax.random.randint(k6, (N3,), 0, C3, dtype=jnp.int32)
    loss3 = jax.block_until_ready(
        smooth_cross_entropy(logits3, labels3, epsilon=0.2, tile_n=64))
    ref3 = _reference(logits3, labels3, epsilon=0.2)
    assert loss3.shape == (N3,)
    assert jnp.allclose(loss3, ref3, atol=1e-4, rtol=1e-4), (loss3, ref3)

    print("KERNEL_OK")
</pallas_src>

<mosaic_0001>
module attributes {stable_mosaic.version = 11 : i64} {
  func.func @_smooth_ce_kernel(%arg0: i32, %arg1: memref<8x32xf32, #tpu.memory_space<vmem>>, %arg2: memref<8x1xi32, #tpu.memory_space<vmem>>, %arg3: memref<8x1xf32, #tpu.memory_space<vmem>>) attributes {dimension_semantics = [#tpu.dimension_semantics<parallel>], iteration_bounds = array<i64: 1>, scalar_prefetch = 0 : i64, scratch_operands = 0 : i64, tpu.core_type = #tpu.core_type<tc>, window_params = [{transform_indices = @transform_0, window_bounds = array<i64: 8, 32>}, {pipeline_mode = #tpu.pipeline_mode<synchronous>, transform_indices = @transform_1, window_bounds = array<i64: 8, 1>}, {transform_indices = @transform_2, window_bounds = array<i64: 8, 1>}]} {
    %c8_i32 = arith.constant 8 : i32
    %0 = arith.muli %arg0, %c8_i32 : i32
    %1 = tpu.iota {dimensions = array<i32: 1>} : vector<8x32xi32>
    %c0 = arith.constant 0 : index
    %c0_0 = arith.constant 0 : index
    %2 = vector.load %arg1[%c0, %c0_0] : memref<8x32xf32, #tpu.memory_space<vmem>>, vector<8x32xf32>
    %c0_i32 = arith.constant 0 : i32
    %3 = arith.addi %0, %c0_i32 : i32
    %4 = tpu.assume_multiple %3, 8 : i32
    %5 = arith.index_cast %4 : i32 to index
    %c0_1 = arith.constant 0 : index
    %6 = vector.load %arg2[%5, %c0_1] : memref<8x1xi32, #tpu.memory_space<vmem>>, vector<8x1xi32>
    %cst = arith.constant dense<0xFF800000> : vector<8xf32>
    %7 = vector.multi_reduction <maximumf>, %2, %cst [1] : vector<8x32xf32> to vector<8xf32>
    %8 = vector.shape_cast %7 : vector<8xf32> to vector<8x1xf32>
    %9 = vector.broadcast %8 : vector<8x1xf32> to vector<8x32xf32>
    %10 = arith.subf %2, %9 : vector<8x32xf32>
    %11 = math.exp %10 : vector<8x32xf32>
    %cst_2 = arith.constant dense<0.000000e+00> : vector<8xf32>
    %12 = vector.multi_reduction <add>, %11, %cst_2 [1] : vector<8x32xf32> to vector<8xf32>
    %13 = vector.shape_cast %12 : vector<8xf32> to vector<8x1xf32>
    %cst_3 = arith.constant 9.99999974E-6 : f32
    %14 = vector.broadcast %cst_3 : f32 to vector<8x1xf32>
    %15 = arith.mulf %14, %13 : vector<8x1xf32>
    %16 = vector.broadcast %15 : vector<8x1xf32> to vector<8x32xf32>
    %17 = arith.addf %11, %16 : vector<8x32xf32>
    %18 = math.log %17 : vector<8x32xf32>
    %19 = math.log %13 : vector<8x1xf32>
    %20 = vector.broadcast %19 : vector<8x1xf32> to vector<8x32xf32>
    %21 = arith.subf %18, %20 : vector<8x32xf32>
    %22 = vector.broadcast %6 : vector<8x1xi32> to vector<8x32xi32>
    %23 = arith.cmpi eq, %1, %22 : vector<8x32xi32>
    %cst_4 = arith.constant 0.899999976 : f32
    %cst_5 = arith.constant 0.0032258064 : f32
    %24 = vector.broadcast %cst_4 : f32 to vector<8x32xf32>
    %25 = vector.broadcast %cst_5 : f32 to vector<8x32xf32>
    %26 = arith.select %23, %24, %25 : vector<8x32xi1>, vector<8x32xf32>
    %27 = arith.mulf %26, %21 : vector<8x32xf32>
    %cst_6 = arith.constant dense<0.000000e+00> : vector<8xf32>
    %28 = vector.multi_reduction <add>, %27, %cst_6 [1] : vector<8x32xf32> to vector<8xf32>
    %29 = vector.shape_cast %28 : vector<8xf32> to vector<8x1xf32>
    %cst_7 = arith.constant -0.668481708 : f32
    %30 = vector.broadcast %cst_7 : f32 to vector<8x1xf32>
    %31 = arith.subf %30, %29 : vector<8x1xf32>
    %c0_8 = arith.constant 0 : index
    %c0_9 = arith.constant 0 : index
    %32 = vector.load %arg3[%c0_8, %c0_9] : memref<8x1xf32, #tpu.memory_space<vmem>>, vector<8x1xf32>
    tpu.vector_store %arg3[%c0_8, %c0_9], %31 {strides = array<i32>} : memref<8x1xf32, #tpu.memory_space<vmem>>, vector<8x1xf32>,
    return
  }
  func.func @transform_0(%arg0: i32) -> (i32, i32) {
    %c0_i32 = arith.constant 0 : i32
    %c0_i32_0 = arith.constant 0 : i32
    return %arg0, %c0_i32 : i32, i32
  }
  func.func @transform_1(%arg0: i32) -> (i32, i32) {
    %c0_i32 = arith.constant 0 : i32
    %c0_i32_0 = arith.constant 0 : i32
    %c0_i32_1 = arith.constant 0 : i32
    return %c0_i32, %c0_i32_0 : i32, i32
  }
  func.func @transform_2(%arg0: i32) -> (i32, i32) {
    %c0_i32 = arith.constant 0 : i32
    %c0_i32_0 = arith.constant 0 : i32
    return %arg0, %c0_i32 : i32, i32
  }
}

</mosaic_0001>

<llo_original>
// kernel: tpu_custom_call.1
$region0: #{tpu_custom_call.1}
  #allocation0 [shape = 'u32[]', space=smem, size = 0x4, offset = 0x4, fixed_abs, tag = 'smem constant byte address 0x4 - core index']
  #allocation1 [shape = 'u32[144,128]{1,0:T(1,128)}', space=vmem, size = 0x12000, scoped, tag = 'internal scratch']
  %s0 = inlined_call_operand.vmem [shape: f32[8,32], index: 0, kind: input, shape index: {}]
  %s1 = inlined_call_operand.vmem [shape: s32[8,1], index: 1, kind: input, shape index: {}]
  %s2 = inlined_call_operand.vmem [shape: f32[8,1], index: 2, kind: output, shape index: {}]
  %s3 = sld [smem:[#allocation0]]
  $region18: #{tpu_custom_call.1} parent=0
    _
  %s5 = ssub.s32 1, %s3
  %s6 = scalar_select 0, %s5, %s3
  // Predicated region
  $region2: #{tpu_custom_call.1} parent=0 // pred_check
    _
  $region3: #{tpu_custom_call.1} parent=0 // pred_check_branch
    %8 = sbr.rel (0) target = $region5
  $region4: #{tpu_custom_call.1} parent=0 // pred_region
    _
  $region5: #{tpu_custom_call.1} parent=0 // pred_fallthru
    _
  // Predicated region
  $region6: #{tpu_custom_call.1} parent=0 // pred_check
    _
  $region7: #{tpu_custom_call.1} parent=0 // pred_check_branch
    %10 = sbr.rel (0) target = $region9
  $region8: #{tpu_custom_call.1} parent=0 // pred_region
    _
  $region9: #{tpu_custom_call.1} parent=0 // pred_fallthru
    _
  %s11 = smul.u32 0, 8
  %v12 = vlaneseq
  %v13 = vand.u32 %v12, 127
  %v14 = vld [vmem:[%s0] sm:$0xff]
  %s15 = scalar_lea.vmem %s1, %s11
  %v16 = vld [vmem:[%s15] sm:$0xff]
  %vm17 = vcmask 261120
  %v18 = vsel %vm17, %v14, -inf
  %19 = vmax.xlane.f32.xlu0 %v18
  %v20 = vpop.xlane.xlu0 %19
  %v21 = vsub.f32 %v14, %v20
  %v22 = vmul.f32 %v21, 1.442695
  %v23 = vpow.pop %v22
  %v24 = vsel %vm17, %v23, 0.0
  %25 = vadd.xlane.f32.xlu0 %v24
  %v26 = vpop.xlane.xlu0 %25
  %v27 = vmul.f32 %v26, 1e-05
  %v28 = vadd.f32 %v23, %v27
  %v29 = vlog2.pop %v28
  %v30 = vmul.f32 %v29, 0.6931472
  %v31 = vlog2.pop %v26
  %v32 = vmul.f32 %v31, 0.6931472
  %v33 = vsub.f32 %v30, %v32
  %34 = vset.pattern.permute.xlu0 0
  %35 = vperm.xlu0 %34, %v16
  %v36 = vpop.permute.xlu0 %35
  %vm37 = vcmp.eq.s32.totalorder %v13, %v36
  %v38 = vsel %vm37, 0.9, 0.0032258064
  %v39 = vmul.f32 %v38, %v33
  %v40 = vsel %vm17, %v39, 0.0
  %41 = vadd.xlane.f32.xlu0 %v40
  %v42 = vpop.xlane.xlu0 %41
  %v43 = vsub.f32 -0.6684817, %v42
  %vm44 = vcmask 7168
  %45 = vst.msk [vmem:[%s2] sm:$0xff] %vm44, %v43
  // Predicated region
  $region10: #{tpu_custom_call.1} parent=0 // pred_check
    _
  $region11: #{tpu_custom_call.1} parent=0 // pred_check_branch
    %47 = sbr.rel (0) target = $region13
  $region12: #{tpu_custom_call.1} parent=0 // pred_region
    _
  $region13: #{tpu_custom_call.1} parent=0 // pred_fallthru
    _
  // Predicated region
  $region14: #{tpu_custom_call.1} parent=0 // pred_check
    _
  $region15: #{tpu_custom_call.1} parent=0 // pred_check_branch
    %49 = sbr.rel (0) target = $region17
  $region16: #{tpu_custom_call.1} parent=0 // pred_region
    _
  $region17: #{tpu_custom_call.1} parent=0 // pred_fallthru
    _

</llo_original>
